<compile_context>
chip_gen: v5e
topology: v5e:2x2
jax: 0.10.0
libtpu: 0.0.40
codegen_flags: <defaults>
</compile_context>

<pallas_src>
import functools

import jax
import jax.numpy as jnp
from jax.experimental import pallas as pl
from jax.experimental.pallas import tpu as pltpu

ALPHA = 0.2          # LeakyReLU negative slope (args.alpha)
NEG_INF = -1e30      # mask value for padded classifier columns (f32 epilogue only!)


def _round_up(x, m):
    return (x + m - 1) // m * m


def _leaky(y, alpha):
    return jnp.where(y > 0, y, alpha * y)


# ------------------------------- fused Pallas kernel --------------------------

def _emgnn_fused_kernel(x_ref, mx_ref, adj_ref, diag_bb_ref, a_bm_ref, a_mb_ref, a_mm_ref,
                        proj_w_ref, hh_w_ref, bias_h_ref, cls_w_ref, cls_b_ref,
                        out_ref, h_ref,
                        *, n_layers, n_base, nclass, alpha):
    """Whole EMGNN forward; h_ref is the resident (t_pad, h_pad) bf16 hidden-state scratch.

    bias_h_ref rows: 0 = linear_b, 1 = meta_linear_b, 2+i = conv_b[i], 2+n_layers = meta_gnn_b.
    hh_w_ref slices: [i] = conv_w[i] for i < n_layers, [n_layers] = meta_gnn_w.
    """
    f32 = jnp.float32
    bf16 = jnp.bfloat16

    # 1) input projections fused with LeakyReLU; results stay resident in VMEM (bf16).
    xh = jnp.dot(x_ref[...], proj_w_ref[0], preferred_element_type=f32) + bias_h_ref[0:1, :]
    h_ref[0:n_base, :] = _leaky(xh, alpha).astype(bf16)
    mh = jnp.dot(mx_ref[...], proj_w_ref[1], preferred_element_type=f32) + bias_h_ref[1:2, :]
    h_ref[n_base:, :] = _leaky(mh, alpha).astype(bf16)

    # 2) GCN stack over the base graph: leakyrelu(A_hat @ (H @ W_i) + b_i).
    adj = adj_ref[...]                                   # bf16 adjacency, loaded once (hoisted)

    def _gcn_layer(i):
        xw = jnp.dot(h_ref[0:n_base, :], hh_w_ref[i], preferred_element_type=f32)
        y = jnp.dot(adj, xw.astype(bf16), preferred_element_type=f32)
        b = bias_h_ref[pl.ds(2 + i, 1), :]
        h_ref[0:n_base, :] = _leaky(y + b, alpha).astype(bf16)

    if n_layers <= 4:
        for i in range(n_layers):                        # static unroll for shallow stacks
            _gcn_layer(i)
    else:
        def _body(i, carry):                             # dynamic indexing for deep stacks
            _gcn_layer(i)
            return carry
        jax.lax.fori_loop(0, n_layers, _body, 0)

    # 3) meta GNN over the "concatenated" buffer, block-sparse:
    #    base rows: diag(A_bb) * XW_base + A_bm @ XW_meta      (VPU row-scale + skinny GEMM)
    #    meta rows: A_mb @ XW_base + A_mm @ XW_meta            (skinny + tiny GEMMs)
    xw = jnp.dot(h_ref[...], hh_w_ref[n_layers], preferred_element_type=f32)
    xw_b = xw[0:n_base, :]
    xw_m = xw[n_base:, :]
    mgnn_b = bias_h_ref[2 + n_layers:3 + n_layers, :]
    base_y = diag_bb_ref[...] * xw_b + jnp.dot(a_bm_ref[...], xw_m.astype(bf16),
                                               preferred_element_type=f32)
    meta_y = (jnp.dot(a_mb_ref[...], xw_b.astype(bf16), preferred_element_type=f32)
              + jnp.dot(a_mm_ref[...], xw_m.astype(bf16), preferred_element_type=f32))
    h_ref[0:n_base, :] = _leaky(base_y + mgnn_b, alpha).astype(bf16)
    h_ref[n_base:, :] = _leaky(meta_y + mgnn_b, alpha).astype(bf16)

    # 4) classifier + log_softmax (padded class columns masked; epilogue stays f32).
    logits = jnp.dot(h_ref[...], cls_w_ref[...], preferred_element_type=f32) + cls_b_ref[...]
    col = jax.lax.broadcasted_iota(jnp.int32, logits.shape, 1)
    logits = jnp.where(col < nclass, logits, NEG_INF)
    m = jnp.max(logits, axis=1, keepdims=True)
    z = logits - m
    lse = jnp.log(jnp.sum(jnp.exp(z), axis=1, keepdims=True))
    out_ref[...] = z - lse


# ------------------------------- graph preprocessing --------------------------

def build_gcn_adj(edge_index, num_nodes):
    """Dense D^-1/2 (A + I) D^-1/2 matching PyG gcn_norm (unit edge weights).

    Duplicate edges scatter-ADD (like PyG); self-loops are only added for nodes that do
    not already have one ("add_remaining_self_loops")."""
    src, dst = edge_index[0], edge_index[1]
    a = jnp.zeros((num_nodes, num_nodes), jnp.float32)
    a = a.at[dst, src].add(1.0)                        # message flows src -> dst
    idx = jnp.arange(num_nodes)
    diag = a[idx, idx]
    a = a.at[idx, idx].set(jnp.where(diag > 0, diag, 1.0))
    deg = jnp.sum(a, axis=1)
    dinv = jnp.where(deg > 0, 1.0 / jnp.sqrt(deg), 0.0)
    return dinv[:, None] * a * dinv[None, :]


def _pad2(a, rows, cols):
    return jnp.zeros((rows, cols), a.dtype).at[:a.shape[0], :a.shape[1]].set(a)


# ------------------------------- params & forward -----------------------------

def init_params(key, nfeat, hidden, nclass, n_layers):
    ks = jax.random.split(key, 6 + 2 * n_layers)
    s = 0.1
    params = {
        "linear_w": s * jax.random.normal(ks[0], (nfeat, hidden), jnp.float32),
        "linear_b": s * jax.random.normal(ks[1], (1, hidden), jnp.float32),
        "meta_linear_w": s * jax.random.normal(ks[2], (nfeat, hidden), jnp.float32),
        "meta_linear_b": s * jax.random.normal(ks[3], (1, hidden), jnp.float32),
        "meta_gnn_w": s * jax.random.normal(ks[4], (hidden, hidden), jnp.float32),
        "meta_gnn_b": s * jax.random.normal(ks[5], (1, hidden), jnp.float32),
        "conv_w": [],
        "conv_b": [],
    }
    for i in range(n_layers):
        params["conv_w"].append(s * jax.random.normal(ks[6 + 2 * i], (hidden, hidden), jnp.float32))
        params["conv_b"].append(s * jax.random.normal(ks[7 + 2 * i], (1, hidden), jnp.float32))
    kc1, kc2 = jax.random.split(jax.random.fold_in(key, 123))
    params["cls_w"] = s * jax.random.normal(kc1, (hidden, nclass), jnp.float32)
    params["cls_b"] = s * jax.random.normal(kc2, (1, nclass), jnp.float32)
    return params


def emgnn_forward(x, edge_index, meta_edge_index, meta_x, params, *, n_layers, nclass,
                  alpha=ALPHA):
    n, nfeat = x.shape
    m = meta_x.shape[0]
    hidden = params["linear_w"].shape[1]

    # Padded/aligned sizes: lanes -> 128, rows -> 16 (bf16-friendly sublane packing).
    n_pad = _round_up(n, 16)
    m_pad = _round_up(m, 16)
    t_pad = n_pad + m_pad
    f_pad = _round_up(nfeat, 128)
    h_pad = _round_up(hidden, 128)
    c_pad = _round_up(nclass, 128)

    bf16 = jnp.bfloat16
    f32 = jnp.float32

    # Base-graph normalized adjacency (dense, bf16, padded). Padded rows/cols are zero,
    # so junk in padded hidden rows never leaks into real rows.
    adj_p = _pad2(build_gcn_adj(edge_index, n), n_pad, n_pad).astype(bf16)

    # Meta-graph adjacency, decomposed into blocks (block-sparse meta step):
    # base-base is diagonal-only (EMGNN meta graphs only connect base<->meta + self-loops).
    # TODO(synk): build these blocks directly from edge lists to avoid the dense (n+m)^2
    #             intermediate on host/HBM for very large graphs.
    meta_adj = build_gcn_adj(meta_edge_index, n + m)
    a_bb = meta_adj[:n, :n]
    offdiag = jnp.max(jnp.abs(a_bb - jnp.diag(jnp.diag(a_bb))))
    try:
        if float(offdiag) > 0.0:
            raise ValueError(
                "block-sparse meta step assumes the meta graph has no base-base edges "
                "(other than self loops); found off-diagonal base-base entries.")
    except jax.errors.ConcretizationTypeError:
        pass  # under jit the check cannot run; assumption documented above.

    diag_bb_p = _pad2(jnp.diag(a_bb).astype(bf16).astype(f32)[:, None], n_pad, 1)
    a_bm_p = _pad2(meta_adj[:n, n:], n_pad, m_pad).astype(bf16)
    a_mb_p = _pad2(meta_adj[n:, :n], m_pad, n_pad).astype(bf16)
    a_mm_p = _pad2(meta_adj[n:, n:], m_pad, m_pad).astype(bf16)

    x_p = _pad2(x, n_pad, f_pad).astype(bf16)
    mx_p = _pad2(meta_x, m_pad, f_pad).astype(bf16)

    # Packed weights / biases: fewer, larger HBM->VMEM copies.
    proj_w = jnp.stack([_pad2(params["linear_w"], f_pad, h_pad),
                        _pad2(params["meta_linear_w"], f_pad, h_pad)]).astype(bf16)
    hh_w = jnp.stack([_pad2(w, h_pad, h_pad) for w in params["conv_w"]]
                     + [_pad2(params["meta_gnn_w"], h_pad, h_pad)]).astype(bf16)
    bias_rows = ([params["linear_b"], params["meta_linear_b"]]
                 + list(params["conv_b"]) + [params["meta_gnn_b"]])
    bias_h = jnp.concatenate([_pad2(b, 1, h_pad) for b in bias_rows], axis=0)  # (L+3, h_pad) f32
    cls_w = _pad2(params["cls_w"], h_pad, c_pad).astype(bf16)
    cls_b = _pad2(params["cls_b"], 1, c_pad)

    inputs = (x_p, mx_p, adj_p, diag_bb_p, a_bm_p, a_mb_p, a_mm_p,
              proj_w, hh_w, bias_h, cls_w, cls_b)

    # VMEM budget: resident inputs + output + hidden scratch, x2 headroom for f32
    # intermediates, clamped to ~80% of this chip's physical VMEM.
    def _nbytes(a):
        return a.size * a.dtype.itemsize
    resident = (sum(_nbytes(a) for a in inputs)
                + t_pad * c_pad * 4            # f32 output
                + t_pad * h_pad * 2)           # bf16 hidden scratch
    try:
        cap = getattr(pltpu.get_tpu_info(), "vmem_capacity_bytes", None)
        ceiling = int(0.8 * cap) if cap else (48 << 20)
    except Exception:
        ceiling = 48 << 20
    vmem_limit = int(min(ceiling, max(32 << 20, 2 * resident + (8 << 20))))

    kernel = functools.partial(_emgnn_fused_kernel, n_layers=n_layers,
                               n_base=n_pad, nclass=nclass, alpha=alpha)

    # No grid: the kernel body runs exactly once, every operand is a VMEM-resident full
    # array (no double-buffering of the O(N^2) adjacency, no pipeline step overhead).
    vspec = pl.BlockSpec(memory_space=pltpu.MemorySpace.VMEM)
    out_p = pl.pallas_call(
        kernel,
        out_shape=jax.ShapeDtypeStruct((t_pad, c_pad), jnp.float32),
        in_specs=[vspec] * len(inputs),
        out_specs=vspec,
        scratch_shapes=[pltpu.VMEM((t_pad, h_pad), jnp.bfloat16)],
        compiler_params=pltpu.CompilerParams(vmem_limit_bytes=vmem_limit),
    )(*inputs)

    # Un-pad: base rows [0:n), meta rows [n_pad:n_pad+m), real class columns [:nclass).
    out = jnp.concatenate([out_p[:n], out_p[n_pad:n_pad + m]], axis=0)[:, :nclass]
    return out


# ------------------------------- plain-JAX reference --------------------------

def emgnn_reference(x, edge_index, meta_edge_index, meta_x, params, n_layers, alpha=ALPHA):
    """Same math as the fused kernel (incl. bf16 matmul operands, dense meta adjacency)."""
    def leaky(v):
        return jnp.where(v > 0, v, alpha * v)

    def bdot(a, b):
        return jnp.dot(a.astype(jnp.bfloat16), b.astype(jnp.bfloat16),
                       preferred_element_type=jnp.float32)

    n = x.shape[0]
    m = meta_x.shape[0]
    adj = build_gcn_adj(edge_index, n)
    meta_adj = build_gcn_adj(meta_edge_index, n + m)

    h = leaky(bdot(x, params["linear_w"]) + params["linear_b"])
    mh = leaky(bdot(meta_x, params["meta_linear_w"]) + params["meta_linear_b"])
    for i in range(n_layers):
        h = leaky(bdot(adj, bdot(h, params["conv_w"][i])) + params["conv_b"][i])
    hc = jnp.concatenate([h, mh], axis=0)
    hc = leaky(bdot(meta_adj, bdot(hc, params["meta_gnn_w"])) + params["meta_gnn_b"])
    logits = bdot(hc, params["cls_w"]) + params["cls_b"]
    return jax.nn.log_softmax(logits, axis=1)


# ------------------------------- main ------------------------------------------

if __name__ == "__main__":
    N = 16          # number of graph nodes
    M = 4           # number of meta nodes
    NFEAT = 8
    HIDDEN = 32
    NCLASS = 4
    N_LAYERS = 2

    key = jax.random.PRNGKey(0)
    kx, kmx, kp = jax.random.split(key, 3)

    x = jax.random.normal(kx, (N, NFEAT), jnp.float32)
    meta_x = jax.random.normal(kmx, (M, NFEAT), jnp.float32)
    params = init_params(kp, NFEAT, HIDDEN, NCLASS, N_LAYERS)

    # Base graph: undirected ring over N nodes -> edge_index [2, 2N]
    i = jnp.arange(N, dtype=jnp.int32)
    j = (i + 1) % N
    edge_index = jnp.stack([jnp.concatenate([i, j]), jnp.concatenate([j, i])], axis=0)

    # Meta graph over N + M nodes: each node i connects (both ways) to meta node N + (i % M)
    mi = jnp.arange(N, dtype=jnp.int32)
    mj = N + (mi % M)
    meta_edge_index = jnp.stack(
        [jnp.concatenate([mi, mj]), jnp.concatenate([mj, mi])], axis=0)

    out = emgnn_forward(x, edge_index, meta_edge_index, meta_x, params,
                        n_layers=N_LAYERS, nclass=NCLASS)
    out = jax.block_until_ready(out)

    assert out.shape == (N + M, NCLASS)
    # log_softmax rows should sum (in prob space) to ~1
    assert jnp.allclose(jnp.sum(jnp.exp(out), axis=1), 1.0, atol=1e-3)
    # match the plain-JAX reference (same bf16 matmul casting, dense meta adjacency)
    ref = emgnn_reference(x, edge_index, meta_edge_index, meta_x, params, N_LAYERS)
    assert jnp.allclose(out, ref, atol=1e-2, rtol=1e-2), float(jnp.max(jnp.abs(out - ref)))
    print("KERNEL_OK")
</pallas_src>

<mosaic_0001>
module attributes {stable_mosaic.version = 11 : i64} {
  func.func @_emgnn_fused_kernel(%arg0: memref<16x128xbf16, #tpu.memory_space<vmem>>, %arg1: memref<16x128xbf16, #tpu.memory_space<vmem>>, %arg2: memref<16x16xbf16, #tpu.memory_space<vmem>>, %arg3: memref<16x1xf32, #tpu.memory_space<vmem>>, %arg4: memref<16x16xbf16, #tpu.memory_space<vmem>>, %arg5: memref<16x16xbf16, #tpu.memory_space<vmem>>, %arg6: memref<16x16xbf16, #tpu.memory_space<vmem>>, %arg7: memref<2x128x128xbf16, #tpu.memory_space<vmem>>, %arg8: memref<3x128x128xbf16, #tpu.memory_space<vmem>>, %arg9: memref<5x128xf32, #tpu.memory_space<vmem>>, %arg10: memref<128x128xbf16, #tpu.memory_space<vmem>>, %arg11: memref<1x128xf32, #tpu.memory_space<vmem>>, %arg12: memref<32x128xf32, #tpu.memory_space<vmem>>, %arg13: memref<32x128xbf16, #tpu.memory_space<vmem>>) attributes {dimension_semantics = [], scalar_prefetch = 0 : i64, scratch_operands = 1 : i64, tpu.core_type = #tpu.core_type<tc>} {
    %c0 = arith.constant 0 : index
    %c0_0 = arith.constant 0 : index
    %0 = vector.load %arg0[%c0, %c0_0] : memref<16x128xbf16, #tpu.memory_space<vmem>>, vector<16x128xbf16>
    %c0_1 = arith.constant 0 : index
    %c0_2 = arith.constant 0 : index
    %c0_3 = arith.constant 0 : index
    %1 = vector.load %arg7[%c0_1, %c0_2, %c0_3] : memref<2x128x128xbf16, #tpu.memory_space<vmem>>, vector<1x128x128xbf16>
    %2 = vector.shape_cast %1 : vector<1x128x128xbf16> to vector<128x128xbf16>
    %cst = arith.constant dense<0.000000e+00> : vector<16x128xf32>
    %3 = tpu.matmul %0, %2, %cst {dimension_numbers = #tpu.dot_dimension_numbers<[1], [0], [0], [1], [0, 0, 1, 1], [], []>} : vector<16x128xbf16>, vector<128x128xbf16>, vector<16x128xf32> -> vector<16x128xf32>
    %c0_4 = arith.constant 0 : index
    %c0_5 = arith.constant 0 : index
    %4 = vector.load %arg9[%c0_4, %c0_5] : memref<5x128xf32, #tpu.memory_space<vmem>>, vector<1x128xf32>
    %5 = vector.broadcast %4 : vector<1x128xf32> to vector<16x128xf32>
    %6 = arith.addf %3, %5 : vector<16x128xf32>
    %cst_6 = arith.constant 0.000000e+00 : f32
    %7 = vector.broadcast %cst_6 : f32 to vector<16x128xf32>
    %8 = arith.cmpf ogt, %6, %7 : vector<16x128xf32>
    %cst_7 = arith.constant 2.000000e-01 : f32
    %9 = vector.broadcast %cst_7 : f32 to vector<16x128xf32>
    %10 = arith.mulf %9, %6 : vector<16x128xf32>
    %11 = arith.select %8, %6, %10 : vector<16x128xi1>, vector<16x128xf32>
    %12 = arith.truncf %11 : vector<16x128xf32> to vector<16x128xbf16>
    %c0_8 = arith.constant 0 : index
    %c0_9 = arith.constant 0 : index
    %13 = vector.load %arg13[%c0_8, %c0_9] : memref<32x128xbf16, #tpu.memory_space<vmem>>, vector<16x128xbf16>
    tpu.vector_store %arg13[%c0_8, %c0_9], %12 {strides = array<i32>} : memref<32x128xbf16, #tpu.memory_space<vmem>>, vector<16x128xbf16>,
    %c0_10 = arith.constant 0 : index
    %c0_11 = arith.constant 0 : index
    %14 = vector.load %arg1[%c0_10, %c0_11] : memref<16x128xbf16, #tpu.memory_space<vmem>>, vector<16x128xbf16>
    %c1 = arith.constant 1 : index
    %c0_12 = arith.constant 0 : index
    %c0_13 = arith.constant 0 : index
    %15 = vector.load %arg7[%c1, %c0_12, %c0_13] : memref<2x128x128xbf16, #tpu.memory_space<vmem>>, vector<1x128x128xbf16>
    %16 = vector.shape_cast %15 : vector<1x128x128xbf16> to vector<128x128xbf16>
    %cst_14 = arith.constant dense<0.000000e+00> : vector<16x128xf32>
    %17 = tpu.matmul %14, %16, %cst_14 {dimension_numbers = #tpu.dot_dimension_numbers<[1], [0], [0], [1], [0, 0, 1, 1], [], []>} : vector<16x128xbf16>, vector<128x128xbf16>, vector<16x128xf32> -> vector<16x128xf32>
    %c1_15 = arith.constant 1 : index
    %c0_16 = arith.constant 0 : index
    %18 = vector.load %arg9[%c1_15, %c0_16] : memref<5x128xf32, #tpu.memory_space<vmem>>, vector<1x128xf32>
    %19 = vector.broadcast %18 : vector<1x128xf32> to vector<16x128xf32>
    %20 = arith.addf %17, %19 : vector<16x128xf32>
    %cst_17 = arith.constant 0.000000e+00 : f32
    %21 = vector.broadcast %cst_17 : f32 to vector<16x128xf32>
    %22 = arith.cmpf ogt, %20, %21 : vector<16x128xf32>
    %cst_18 = arith.constant 2.000000e-01 : f32
    %23 = vector.broadcast %cst_18 : f32 to vector<16x128xf32>
    %24 = arith.mulf %23, %20 : vector<16x128xf32>
    %25 = arith.select %22, %20, %24 : vector<16x128xi1>, vector<16x128xf32>
    %26 = arith.truncf %25 : vector<16x128xf32> to vector<16x128xbf16>
    %c16 = arith.constant 16 : index
    %c0_19 = arith.constant 0 : index
    %27 = vector.load %arg13[%c16, %c0_19] : memref<32x128xbf16, #tpu.memory_space<vmem>>, vector<16x128xbf16>
    tpu.vector_store %arg13[%c16, %c0_19], %26 {strides = array<i32>} : memref<32x128xbf16, #tpu.memory_space<vmem>>, vector<16x128xbf16>,
    %c0_20 = arith.constant 0 : index
    %c0_21 = arith.constant 0 : index
    %28 = vector.load %arg2[%c0_20, %c0_21] : memref<16x16xbf16, #tpu.memory_space<vmem>>, vector<16x16xbf16>
    %c0_22 = arith.constant 0 : index
    %c0_23 = arith.constant 0 : index
    %29 = vector.load %arg13[%c0_22, %c0_23] : memref<32x128xbf16, #tpu.memory_space<vmem>>, vector<16x128xbf16>
    %c0_24 = arith.constant 0 : index
    %c0_25 = arith.constant 0 : index
    %c0_26 = arith.constant 0 : index
    %30 = vector.load %arg8[%c0_24, %c0_25, %c0_26] : memref<3x128x128xbf16, #tpu.memory_space<vmem>>, vector<1x128x128xbf16>
    %31 = vector.shape_cast %30 : vector<1x128x128xbf16> to vector<128x128xbf16>
    %cst_27 = arith.constant dense<0.000000e+00> : vector<16x128xf32>
    %32 = tpu.matmul %29, %31, %cst_27 {dimension_numbers = #tpu.dot_dimension_numbers<[1], [0], [0], [1], [0, 0, 1, 1], [], []>} : vector<16x128xbf16>, vector<128x128xbf16>, vector<16x128xf32> -> vector<16x128xf32>
    %33 = arith.truncf %32 : vector<16x128xf32> to vector<16x128xbf16>
    %cst_28 = arith.constant dense<0.000000e+00> : vector<16x128xf32>
    %34 = tpu.matmul %28, %33, %cst_28 {dimension_numbers = #tpu.dot_dimension_numbers<[1], [0], [0], [1], [0, 0, 1, 1], [], []>} : vector<16x16xbf16>, vector<16x128xbf16>, vector<16x128xf32> -> vector<16x128xf32>
    %c2 = arith.constant 2 : index
    %c0_29 = arith.constant 0 : index
    %35 = vector.load %arg9[%c2, %c0_29] : memref<5x128xf32, #tpu.memory_space<vmem>>, vector<1x128xf32>
    %36 = vector.broadcast %35 : vector<1x128xf32> to vector<16x128xf32>
    %37 = arith.addf %34, %36 : vector<16x128xf32>
    %cst_30 = arith.constant 0.000000e+00 : f32
    %38 = vector.broadcast %cst_30 : f32 to vector<16x128xf32>
    %39 = arith.cmpf ogt, %37, %38 : vector<16x128xf32>
    %cst_31 = arith.constant 2.000000e-01 : f32
    %40 = vector.broadcast %cst_31 : f32 to vector<16x128xf32>
    %41 = arith.mulf %40, %37 : vector<16x128xf32>
    %42 = arith.select %39, %37, %41 : vector<16x128xi1>, vector<16x128xf32>
    %43 = arith.truncf %42 : vector<16x128xf32> to vector<16x128xbf16>
    %c0_32 = arith.constant 0 : index
    %c0_33 = arith.constant 0 : index
    %44 = vector.load %arg13[%c0_32, %c0_33] : memref<32x128xbf16, #tpu.memory_space<vmem>>, vector<16x128xbf16>
    tpu.vector_store %arg13[%c0_32, %c0_33], %43 {strides = array<i32>} : memref<32x128xbf16, #tpu.memory_space<vmem>>, vector<16x128xbf16>,
    %c0_34 = arith.constant 0 : index
    %c0_35 = arith.constant 0 : index
    %45 = vector.load %arg13[%c0_34, %c0_35] : memref<32x128xbf16, #tpu.memory_space<vmem>>, vector<16x128xbf16>
    %c1_36 = arith.constant 1 : index
    %c0_37 = arith.constant 0 : index
    %c0_38 = arith.constant 0 : index
    %46 = vector.load %arg8[%c1_36, %c0_37, %c0_38] : memref<3x128x128xbf16, #tpu.memory_space<vmem>>, vector<1x128x128xbf16>
    %47 = vector.shape_cast %46 : vector<1x128x128xbf16> to vector<128x128xbf16>
    %cst_39 = arith.constant dense<0.000000e+00> : vector<16x128xf32>
    %48 = tpu.matmul %45, %47, %cst_39 {dimension_numbers = #tpu.dot_dimension_numbers<[1], [0], [0], [1], [0, 0, 1, 1], [], []>} : vector<16x128xbf16>, vector<128x128xbf16>, vector<16x128xf32> -> vector<16x128xf32>
    %49 = arith.truncf %48 : vector<16x128xf32> to vector<16x128xbf16>
    %cst_40 = arith.constant dense<0.000000e+00> : vector<16x128xf32>
    %50 = tpu.matmul %28, %49, %cst_40 {dimension_numbers = #tpu.dot_dimension_numbers<[1], [0], [0], [1], [0, 0, 1, 1], [], []>} : vector<16x16xbf16>, vector<16x128xbf16>, vector<16x128xf32> -> vector<16x128xf32>
    %c3 = arith.constant 3 : index
    %c0_41 = arith.constant 0 : index
    %51 = vector.load %arg9[%c3, %c0_41] : memref<5x128xf32, #tpu.memory_space<vmem>>, vector<1x128xf32>
    %52 = vector.broadcast %51 : vector<1x128xf32> to vector<16x128xf32>
    %53 = arith.addf %50, %52 : vector<16x128xf32>
    %cst_42 = arith.constant 0.000000e+00 : f32
    %54 = vector.broadcast %cst_42 : f32 to vector<16x128xf32>
    %55 = arith.cmpf ogt, %53, %54 : vector<16x128xf32>
    %cst_43 = arith.constant 2.000000e-01 : f32
    %56 = vector.broadcast %cst_43 : f32 to vector<16x128xf32>
    %57 = arith.mulf %56, %53 : vector<16x128xf32>
    %58 = arith.select %55, %53, %57 : vector<16x128xi1>, vector<16x128xf32>
    %59 = arith.truncf %58 : vector<16x128xf32> to vector<16x128xbf16>
    %c0_44 = arith.constant 0 : index
    %c0_45 = arith.constant 0 : index
    %60 = vector.load %arg13[%c0_44, %c0_45] : memref<32x128xbf16, #tpu.memory_space<vmem>>, vector<16x128xbf16>
    tpu.vector_store %arg13[%c0_44, %c0_45], %59 {strides = array<i32>} : memref<32x128xbf16, #tpu.memory_space<vmem>>, vector<16x128xbf16>,
    %c0_46 = arith.constant 0 : index
    %c0_47 = arith.constant 0 : index
    %61 = vector.load %arg13[%c0_46, %c0_47] : memref<32x128xbf16, #tpu.memory_space<vmem>>, vector<32x128xbf16>
    %c2_48 = arith.constant 2 : index
    %c0_49 = arith.constant 0 : index
    %c0_50 = arith.constant 0 : index
    %62 = vector.load %arg8[%c2_48, %c0_49, %c0_50] : memref<3x128x128xbf16, #tpu.memory_space<vmem>>, vector<1x128x128xbf16>
    %63 = vector.shape_cast %62 : vector<1x128x128xbf16> to vector<128x128xbf16>
    %cst_51 = arith.constant dense<0.000000e+00> : vector<32x128xf32>
    %64 = tpu.matmul %61, %63, %cst_51 {dimension_numbers = #tpu.dot_dimension_numbers<[1], [0], [0], [1], [0, 0, 1, 1], [], []>} : vector<32x128xbf16>, vector<128x128xbf16>, vector<32x128xf32> -> vector<32x128xf32>
    %65 = vector.extract_strided_slice %64 {offsets = [0, 0], sizes = [16, 128], strides = [1, 1]} : vector<32x128xf32> to vector<16x128xf32>
    %66 = vector.extract_strided_slice %64 {offsets = [16, 0], sizes = [16, 128], strides = [1, 1]} : vector<32x128xf32> to vector<16x128xf32>
    %c4 = arith.constant 4 : index
    %c0_52 = arith.constant 0 : index
    %67 = vector.load %arg9[%c4, %c0_52] : memref<5x128xf32, #tpu.memory_space<vmem>>, vector<1x128xf32>
    %c0_53 = arith.constant 0 : index
    %c0_54 = arith.constant 0 : index
    %68 = vector.load %arg3[%c0_53, %c0_54] : memref<16x1xf32, #tpu.memory_space<vmem>>, vector<16x1xf32>
    %69 = vector.broadcast %68 : vector<16x1xf32> to vector<16x128xf32>
    %70 = arith.mulf %69, %65 : vector<16x128xf32>
    %c0_55 = arith.constant 0 : index
    %c0_56 = arith.constant 0 : index
    %71 = vector.load %arg4[%c0_55, %c0_56] : memref<16x16xbf16, #tpu.memory_space<vmem>>, vector<16x16xbf16>
    %72 = arith.truncf %66 : vector<16x128xf32> to vector<16x128xbf16>
    %cst_57 = arith.constant dense<0.000000e+00> : vector<16x128xf32>
    %73 = tpu.matmul %71, %72, %cst_57 {dimension_numbers = #tpu.dot_dimension_numbers<[1], [0], [0], [1], [0, 0, 1, 1], [], []>} : vector<16x16xbf16>, vector<16x128xbf16>, vector<16x128xf32> -> vector<16x128xf32>
    %74 = arith.addf %70, %73 : vector<16x128xf32>
    %c0_58 = arith.constant 0 : index
    %c0_59 = arith.constant 0 : index
    %75 = vector.load %arg5[%c0_58, %c0_59] : memref<16x16xbf16, #tpu.memory_space<vmem>>, vector<16x16xbf16>
    %76 = arith.truncf %65 : vector<16x128xf32> to vector<16x128xbf16>
    %cst_60 = arith.constant dense<0.000000e+00> : vector<16x128xf32>
    %77 = tpu.matmul %75, %76, %cst_60 {dimension_numbers = #tpu.dot_dimension_numbers<[1], [0], [0], [1], [0, 0, 1, 1], [], []>} : vector<16x16xbf16>, vector<16x128xbf16>, vector<16x128xf32> -> vector<16x128xf32>
    %c0_61 = arith.constant 0 : index
    %c0_62 = arith.constant 0 : index
    %78 = vector.load %arg6[%c0_61, %c0_62] : memref<16x16xbf16, #tpu.memory_space<vmem>>, vector<16x16xbf16>
    %79 = arith.truncf %66 : vector<16x128xf32> to vector<16x128xbf16>
    %cst_63 = arith.constant dense<0.000000e+00> : vector<16x128xf32>
    %80 = tpu.matmul %78, %79, %cst_63 {dimension_numbers = #tpu.dot_dimension_numbers<[1], [0], [0], [1], [0, 0, 1, 1], [], []>} : vector<16x16xbf16>, vector<16x128xbf16>, vector<16x128xf32> -> vector<16x128xf32>
    %81 = arith.addf %77, %80 : vector<16x128xf32>
    %82 = vector.broadcast %67 : vector<1x128xf32> to vector<16x128xf32>
    %83 = arith.addf %74, %82 : vector<16x128xf32>
    %cst_64 = arith.constant 0.000000e+00 : f32
    %84 = vector.broadcast %cst_64 : f32 to vector<16x128xf32>
    %85 = arith.cmpf ogt, %83, %84 : vector<16x128xf32>
    %cst_65 = arith.constant 2.000000e-01 : f32
    %86 = vector.broadcast %cst_65 : f32 to vector<16x128xf32>
    %87 = arith.mulf %86, %83 : vector<16x128xf32>
    %88 = arith.select %85, %83, %87 : vector<16x128xi1>, vector<16x128xf32>
    %89 = arith.truncf %88 : vector<16x128xf32> to vector<16x128xbf16>
    %c0_66 = arith.constant 0 : index
    %c0_67 = arith.constant 0 : index
    %90 = vector.load %arg13[%c0_66, %c0_67] : memref<32x128xbf16, #tpu.memory_space<vmem>>, vector<16x128xbf16>
    tpu.vector_store %arg13[%c0_66, %c0_67], %89 {strides = array<i32>} : memref<32x128xbf16, #tpu.memory_space<vmem>>, vector<16x128xbf16>,
    %91 = vector.broadcast %67 : vector<1x128xf32> to vector<16x128xf32>
    %92 = arith.addf %81, %91 : vector<16x128xf32>
    %cst_68 = arith.constant 0.000000e+00 : f32
    %93 = vector.broadcast %cst_68 : f32 to vector<16x128xf32>
    %94 = arith.cmpf ogt, %92, %93 : vector<16x128xf32>
    %cst_69 = arith.constant 2.000000e-01 : f32
    %95 = vector.broadcast %cst_69 : f32 to vector<16x128xf32>
    %96 = arith.mulf %95, %92 : vector<16x128xf32>
    %97 = arith.select %94, %92, %96 : vector<16x128xi1>, vector<16x128xf32>
    %98 = arith.truncf %97 : vector<16x128xf32> to vector<16x128xbf16>
    %c16_70 = arith.constant 16 : index
    %c0_71 = arith.constant 0 : index
    %99 = vector.load %arg13[%c16_70, %c0_71] : memref<32x128xbf16, #tpu.memory_space<vmem>>, vector<16x128xbf16>
    tpu.vector_store %arg13[%c16_70, %c0_71], %98 {strides = array<i32>} : memref<32x128xbf16, #tpu.memory_space<vmem>>, vector<16x128xbf16>,
    %c0_72 = arith.constant 0 : index
    %c0_73 = arith.constant 0 : index
    %100 = vector.load %arg13[%c0_72, %c0_73] : memref<32x128xbf16, #tpu.memory_space<vmem>>, vector<32x128xbf16>
    %c0_74 = arith.constant 0 : index
    %c0_75 = arith.constant 0 : index
    %101 = vector.load %arg10[%c0_74, %c0_75] : memref<128x128xbf16, #tpu.memory_space<vmem>>, vector<128x128xbf16>
    %cst_76 = arith.constant dense<0.000000e+00> : vector<32x128xf32>
    %102 = tpu.matmul %100, %101, %cst_76 {dimension_numbers = #tpu.dot_dimension_numbers<[1], [0], [0], [1], [0, 0, 1, 1], [], []>} : vector<32x128xbf16>, vector<128x128xbf16>, vector<32x128xf32> -> vector<32x128xf32>
    %c0_77 = arith.constant 0 : index
    %c0_78 = arith.constant 0 : index
    %103 = vector.load %arg11[%c0_77, %c0_78] : memref<1x128xf32, #tpu.memory_space<vmem>>, vector<1x128xf32>
    %104 = vector.broadcast %103 : vector<1x128xf32> to vector<32x128xf32>
    %105 = arith.addf %102, %104 : vector<32x128xf32>
    %106 = tpu.iota {dimensions = array<i32: 1>} : vector<32x128xi32>
    %c4_i32 = arith.constant 4 : i32
    %107 = vector.broadcast %c4_i32 : i32 to vector<32x128xi32>
    %108 = arith.cmpi slt, %106, %107 : vector<32x128xi32>
    %cst_79 = arith.constant -1.000000e+30 : f32
    %109 = vector.broadcast %cst_79 : f32 to vector<32x128xf32>
    %110 = arith.select %108, %105, %109 : vector<32x128xi1>, vector<32x128xf32>
    %cst_80 = arith.constant dense<0xFF800000> : vector<32xf32>
    %111 = vector.multi_reduction <maximumf>, %110, %cst_80 [1] : vector<32x128xf32> to vector<32xf32>
    %112 = vector.shape_cast %111 : vector<32xf32> to vector<32x1xf32>
    %113 = vector.broadcast %112 : vector<32x1xf32> to vector<32x128xf32>
    %114 = arith.subf %110, %113 : vector<32x128xf32>
    %115 = math.exp %114 : vector<32x128xf32>
    %cst_81 = arith.constant dense<0.000000e+00> : vector<32xf32>
    %116 = vector.multi_reduction <add>, %115, %cst_81 [1] : vector<32x128xf32> to vector<32xf32>
    %117 = vector.shape_cast %116 : vector<32xf32> to vector<32x1xf32>
    %118 = math.log %117 : vector<32x1xf32>
    %119 = vector.broadcast %118 : vector<32x1xf32> to vector<32x128xf32>
    %120 = arith.subf %114, %119 : vector<32x128xf32>
    %c0_82 = arith.constant 0 : index
    %c0_83 = arith.constant 0 : index
    %121 = vector.load %arg12[%c0_82, %c0_83] : memref<32x128xf32, #tpu.memory_space<vmem>>, vector<32x128xf32>
    tpu.vector_store %arg12[%c0_82, %c0_83], %120 {strides = array<i32>} : memref<32x128xf32, #tpu.memory_space<vmem>>, vector<32x128xf32>,
    return
  }
}

</mosaic_0001>

<llo_original>
// kernel: tpu_custom_call.1
$region0: #{tpu_custom_call.1}
  #allocation0 [shape = 'u32[]', space=smem, size = 0x4, offset = 0x4, fixed_abs, tag = 'smem constant byte address 0x4 - core index']
  #allocation1 [shape = 'u32[72,128]{1,0:T(1,128)}', space=vmem, size = 0x9000, scoped, tag = 'internal scratch']
  #allocation2 [shape = 'bf16[32,128]{1,0:T(8,128)(2,1)}', space=vmem, size = 0x2000, scoped, tag = 'scratch operand']
  %s0 = inlined_call_operand.vmem [shape: bf16[16,128], index: 0, kind: input, shape index: {}]
  %s1 = inlined_call_operand.vmem [shape: bf16[16,128], index: 1, kind: input, shape index: {}]
  %s2 = inlined_call_operand.hbm [shape: bf16[16,16], index: 2, kind: input, shape index: {}]
  %s3 = inlined_call_operand.vmem [shape: f32[16,1], index: 3, kind: input, shape index: {}]
  %s4 = inlined_call_operand.hbm [shape: bf16[16,16], index: 4, kind: input, shape index: {}]
  %s5 = inlined_call_operand.hbm [shape: bf16[16,16], index: 5, kind: input, shape index: {}]
  %s6 = inlined_call_operand.hbm [shape: bf16[16,16], index: 6, kind: input, shape index: {}]
  %s7 = inlined_call_operand.hbm [shape: bf16[2,128,128], index: 7, kind: input, shape index: {}]
  %s8 = inlined_call_operand.hbm [shape: bf16[3,128,128], index: 8, kind: input, shape index: {}]
  %s9 = inlined_call_operand.hbm [shape: f32[5,128], index: 9, kind: input, shape index: {}]
  %s10 = inlined_call_operand.hbm [shape: bf16[128,128], index: 10, kind: input, shape index: {}]
  %s11 = inlined_call_operand.vmem [shape: f32[1,128], index: 11, kind: input, shape index: {}]
  %s12 = inlined_call_operand.hbm [shape: f32[32,128], index: 12, kind: output, shape index: {}]
  %s13 = sld [smem:[#allocation0]]
  $region90: #{tpu_custom_call.1} parent=0
    _
  %s15 = ssub.s32 1, %s13
  %s16 = scalar_select 0, %s15, %s13
  $region1: #{tpu_custom_call.1} parent=0
    #allocation3 [shape = 'u8[4096]{0}', space=vmem, size = 0x1000, scoped, tag = 'input window, operand 2, single buffered']
    #allocation4 [shape = 's32[1]{0}', space=sflag, size = 0x4, scoped, tag = 'scoped memory for tpu_custom_call.1']
    #allocation5 [shape = 's32[1]{0}', space=sflag, size = 0x4, scoped, tag = 'scoped memory for tpu_custom_call.1']
    #allocation6 [shape = 'u8[4096]{0}', space=vmem, size = 0x1000, scoped, tag = 'input window, operand 4, single buffered']
    #allocation7 [shape = 's32[1]{0}', space=sflag, size = 0x4, scoped, tag = 'scoped memory for tpu_custom_call.1']
    #allocation8 [shape = 'u8[4096]{0}', space=vmem, size = 0x1000, scoped, tag = 'input window, operand 5, single buffered']
    #allocation9 [shape = 'u8[4096]{0}', space=vmem, size = 0x1000, scoped, tag = 'input window, operand 6, single buffered']
    #allocation10 [shape = 's32[1]{0}', space=sflag, size = 0x4, scoped, tag = 'scoped memory for tpu_custom_call.1']
    #allocation11 [shape = 'u8[65536]{0}', space=vmem, size = 0x10000, scoped, tag = 'input window, operand 7, single buffered']
    #allocation12 [shape = 'u8[98304]{0}', space=vmem, size = 0x18000, scoped, tag = 'input window, operand 8, single buffered']
    #allocation13 [shape = 's32[1]{0}', space=sflag, size = 0x4, scoped, tag = 'scoped memory for tpu_custom_call.1']
    #allocation14 [shape = 'u8[4096]{0}', space=vmem, size = 0x1000, scoped, tag = 'input window, operand 9, single buffered']
    #allocation15 [shape = 'u8[32768]{0}', space=vmem, size = 0x8000, scoped, tag = 'input window, operand 10, single buffered']
    #allocation16 [shape = 's32[1]{0}', space=sflag, size = 0x4, scoped, tag = 'scoped memory for tpu_custom_call.1']
    #allocation17 [shape = 'u8[16384]{0}', space=vmem, size = 0x4000, scoped, tag = 'output window, operand 0, single buffered']
    %17 = vsyncpa [#allocation4], 0
    %18 = vsyncpa [#allocation7], 0
    %19 = vsyncpa [#allocation10], 0
    %20 = vsyncpa [#allocation13], 0
    %21 = vsyncpa [#allocation16], 0
    %22 = vsyncpa [#allocation5], 0
    // Predicated region
    $region2: #{tpu_custom_call.1} parent=1 // pred_check
      _
    $region3: #{tpu_custom_call.1} parent=1 // pred_check_branch
      %24 = sbr.rel (0) target = $region5
    $region4: #{tpu_custom_call.1} parent=1 // pred_region
      _
    $region5: #{tpu_custom_call.1} parent=1 // pred_fallthru
      _
    // Predicated region
    $region6: #{tpu_custom_call.1} parent=1 // pred_check
      _
    $region7: #{tpu_custom_call.1} parent=1 // pred_check_branch
      %26 = sbr.rel (0) target = $region9
    $region8: #{tpu_custom_call.1} parent=1 // pred_region
      _
    $region9: #{tpu_custom_call.1} parent=1 // pred_fallthru
      _
    // Predicated region
    $region10: #{tpu_custom_call.1} parent=1 // pred_check
      _
    $region11: #{tpu_custom_call.1} parent=1 // pred_check_branch
      %28 = sbr.rel (0) target = $region13
    $region12: #{tpu_custom_call.1} parent=1 // pred_region
      %30 = vsyncadd [#allocation4], 0
      %s31 = sshll.u32 %s2, 4
      %s32 = int_to_ptr.hbm [resolvable:$true] %s31
      %s33 = sshll.u32 [#allocation3], 4
      %s34 = int_to_ptr.vmem [resolvable:$true] %s33
      %39 = dma.hbm_to_vmem [thread:$0]  %s32, 128, %s34, [#allocation4], 64, 64, 4
    $region13: #{tpu_custom_call.1} parent=1 // pred_fallthru
      _
    // Predicated region
    $region14: #{tpu_custom_call.1} parent=1 // pred_check
      _
    $region15: #{tpu_custom_call.1} parent=1 // pred_check_branch
      %41 = sbr.rel (0) target = $region17
    $region16: #{tpu_custom_call.1} parent=1 // pred_region
      _
    $region17: #{tpu_custom_call.1} parent=1 // pred_fallthru
      _
    // Predicated region
    $region18: #{tpu_custom_call.1} parent=1 // pred_check
      _
    $region19: #{tpu_custom_call.1} parent=1 // pred_check_branch
      %43 = sbr.rel (0) target = $region21
    $region20: #{tpu_custom_call.1} parent=1 // pred_region
      %45 = vsyncadd [#allocation7], 0
      %s46 = sshll.u32 %s4, 4
      %s47 = int_to_ptr.hbm [resolvable:$true] %s46
      %s48 = sshll.u32 [#allocation6], 4
      %s49 = int_to_ptr.vmem [resolvable:$true] %s48
      %54 = dma.hbm_to_vmem [thread:$0]  %s47, 128, %s49, [#allocation7], 64, 64, 4
    $region21: #{tpu_custom_call.1} parent=1 // pred_fallthru
      _
    // Predicated region
    $region22: #{tpu_custom_call.1} parent=1 // pred_check
      _
    $region23: #{tpu_custom_call.1} parent=1 // pred_check_branch
      %56 = sbr.rel (0) target = $region25
    $region24: #{tpu_custom_call.1} parent=1 // pred_region
      %58 = vsyncadd [#allocation7], 0
      %s59 = sshll.u32 %s5, 4
      %s60 = int_to_ptr.hbm [resolvable:$true] %s59
      %s61 = sshll.u32 [#allocation8], 4
      %s62 = int_to_ptr.vmem [resolvable:$true] %s61
      %67 = dma.hbm_to_vmem [thread:$0]  %s60, 128, %s62, [#allocation7], 64, 64, 4
    $region25: #{tpu_custom_call.1} parent=1 // pred_fallthru
      _
    // Predicated region
    $region26: #{tpu_custom_call.1} parent=1 // pred_check
      _
    $region27: #{tpu_custom_call.1} parent=1 // pred_check_branch
      %69 = sbr.rel (0) target = $region29
    $region28: #{tpu_custom_call.1} parent=1 // pred_region
      %71 = vsyncadd [#allocation10], 0
      %s72 = sshll.u32 %s6, 4
      %s73 = int_to_ptr.hbm [resolvable:$true] %s72
      %s74 = sshll.u32 [#allocation9], 4
      %s75 = int_to_ptr.vmem [resolvable:$true] %s74
      %80 = dma.hbm_to_vmem [thread:$0]  %s73, 128, %s75, [#allocation10], 64, 64, 4
    $region29: #{tpu_custom_call.1} parent=1 // pred_fallthru
      _
    // Predicated region
    $region30: #{tpu_custom_call.1} parent=1 // pred_check
      _
    $region31: #{tpu_custom_call.1} parent=1 // pred_check_branch
      %82 = sbr.rel (0) target = $region33
    $region32: #{tpu_custom_call.1} parent=1 // pred_region
      %84 = vsyncadd [#allocation10], 0
      %s85 = sshll.u32 %s7, 4
      %s86 = int_to_ptr.hbm [resolvable:$true] %s85
      %s87 = sshll.u32 [#allocation11], 4
      %s88 = int_to_ptr.vmem [resolvable:$true] %s87
      %93 = dma.hbm_to_vmem [thread:$0]  %s86, 2048, %s88, [#allocation10], 64, 64, 4
    $region33: #{tpu_custom_call.1} parent=1 // pred_fallthru
      _
    // Predicated region
    $region34: #{tpu_custom_call.1} parent=1 // pred_check
      _
    $region35: #{tpu_custom_call.1} parent=1 // pred_check_branch
      %95 = sbr.rel (0) target = $region37
    $region36: #{tpu_custom_call.1} parent=1 // pred_region
      %97 = vsyncadd [#allocation13], 0
      %s98 = sshll.u32 %s8, 4
      %s99 = int_to_ptr.hbm [resolvable:$true] %s98
      %s100 = sshll.u32 [#allocation12], 4
      %s101 = int_to_ptr.vmem [resolvable:$true] %s100
      %106 = dma.hbm_to_vmem [thread:$0]  %s99, 3072, %s101, [#allocation13], 64, 64, 4
    $region37: #{tpu_custom_call.1} parent=1 // pred_fallthru
      _
    // Predicated region
    $region38: #{tpu_custom_call.1} parent=1 // pred_check
      _
    $region39: #{tpu_custom_call.1} parent=1 // pred_check_branch
      %108 = sbr.rel (0) target = $region41
    $region40: #{tpu_custom_call.1} parent=1 // pred_region
      %110 = vsyncadd [#allocation13], 0
      %s112 = sshll.u32 %s9, 4
      %s113 = int_to_ptr.hbm [resolvable:$true] %s112
      %s114 = sshll.u32 [#allocation14], 4
      %s115 = int_to_ptr.vmem [resolvable:$true] %s114
      %117 = dma.hbm_to_vmem [thread:$0]  %s113, 128, %s115, [#allocation13]
    $region41: #{tpu_custom_call.1} parent=1 // pred_fallthru
      _
    // Predicated region
    $region42: #{tpu_custom_call.1} parent=1 // pred_check
      _
    $region43: #{tpu_custom_call.1} parent=1 // pred_check_branch
      %119 = sbr.rel (0) target = $region45
    $region44: #{tpu_custom_call.1} parent=1 // pred_region
      %121 = vsyncadd [#allocation16], 0
      %s122 = sshll.u32 %s10, 4
      %s123 = int_to_ptr.hbm [resolvable:$true] %s122
      %s124 = sshll.u32 [#allocation15], 4
      %s125 = int_to_ptr.vmem [resolvable:$true] %s124
      %130 = dma.hbm_to_vmem [thread:$0]  %s123, 1024, %s125, [#allocation16], 64, 64, 4
    $region45: #{tpu_custom_call.1} parent=1 // pred_fallthru
      _
    // Predicated region
    $region46: #{tpu_custom_call.1} parent=1 // pred_check
      _
    $region47: #{tpu_custom_call.1} parent=1 // pred_check_branch
      %132 = sbr.rel (0) target = $region49
    $region48: #{tpu_custom_call.1} parent=1 // pred_region
      _
    $region49: #{tpu_custom_call.1} parent=1 // pred_fallthru
      _
    // Predicated region
    $region50: #{tpu_custom_call.1} parent=1 // pred_check
      _
    $region51: #{tpu_custom_call.1} parent=1 // pred_check_branch
      %134 = sbr.rel (0) target = $region53
    $region52: #{tpu_custom_call.1} parent=1 // pred_region
      %136 = dma.done [#allocation4], 128
    $region53: #{tpu_custom_call.1} parent=1 // pred_fallthru
      _
    // Predicated region
    $region54: #{tpu_custom_call.1} parent=1 // pred_check
      _
    $region55: #{tpu_custom_call.1} parent=1 // pred_check_branch
      %138 = sbr.rel (0) target = $region57
    $region56: #{tpu_custom_call.1} parent=1 // pred_region
      %140 = dma.done [#allocation7], 128
    $region57: #{tpu_custom_call.1} parent=1 // pred_fallthru
      _
    // Predicated region
    $region58: #{tpu_custom_call.1} parent=1 // pred_check
      _
    $region59: #{tpu_custom_call.1} parent=1 // pred_check_branch
      %142 = sbr.rel (0) target = $region61
    $region60: #{tpu_custom_call.1} parent=1 // pred_region
      %144 = dma.done [#allocation7], 128
    $region61: #{tpu_custom_call.1} parent=1 // pred_fallthru
      _
    // Predicated region
    $region62: #{tpu_custom_call.1} parent=1 // pred_check
      _
    $region63: #{tpu_custom_call.1} parent=1 // pred_check_branch
      %146 = sbr.rel (0) target = $region65
    $region64: #{tpu_custom_call.1} parent=1 // pred_region
      %148 = dma.done [#allocation10], 128
    $region65: #{tpu_custom_call.1} parent=1 // pred_fallthru
      _
    // Predicated region
    $region66: #{tpu_custom_call.1} parent=1 // pred_check
      _
    $region67: #{tpu_custom_call.1} parent=1 // pred_check_branch
      %150 = sbr.rel (0) target = $region69
    $region68: #{tpu_custom_call.1} parent=1 // pred_region
      %152 = dma.done [#allocation10], 2048
    $region69: #{tpu_custom_call.1} parent=1 // pred_fallthru
      _
    // Predicated region
    $region70: #{tpu_custom_call.1} parent=1 // pred_check
      _
    $region71: #{tpu_custom_call.1} parent=1 // pred_check_branch
      %154 = sbr.rel (0) target = $region73
    $region72: #{tpu_custom_call.1} parent=1 // pred_region
      %156 = dma.done [#allocation13], 3072
    $region73: #{tpu_custom_call.1} parent=1 // pred_fallthru
      _
    // Predicated region
    $region74: #{tpu_custom_call.1} parent=1 // pred_check
      _
    $region75: #{tpu_custom_call.1} parent=1 // pred_check_branch
      %158 = sbr.rel (0) target = $region77
    $region76: #{tpu_custom_call.1} parent=1 // pred_region
      %160 = dma.done [#allocation13], 128
    $region77: #{tpu_custom_call.1} parent=1 // pred_fallthru
      _
    // Predicated region
    $region78: #{tpu_custom_call.1} parent=1 // pred_check
      _
    $region79: #{tpu_custom_call.1} parent=1 // pred_check_branch
      %162 = sbr.rel (0) target = $region81
    $region80: #{tpu_custom_call.1} parent=1 // pred_region
      %164 = dma.done [#allocation16], 1024
    $region81: #{tpu_custom_call.1} parent=1 // pred_fallthru
      _
    %v166 = vld [vmem:[%s0] sm:$0xf]
    %v167 = vld [vmem:[%s0 + $0x4] sm:$0xf]
    %v168 = vld [vmem:[#allocation11] sm:$0xf]
    %v169 = vld [vmem:[#allocation11 + $0x4] sm:$0xf]
    %v170 = vld [vmem:[#allocation11 + $0x8] sm:$0xf]
    %v171 = vld [vmem:[#allocation11 + $0xc] sm:$0xf]
    %v172 = vld [vmem:[#allocation11 + $0x10] sm:$0xf]
    %v173 = vld [vmem:[#allocation11 + $0x14] sm:$0xf]
    %v174 = vld [vmem:[#allocation11 + $0x18] sm:$0xf]
    %v175 = vld [vmem:[#allocation11 + $0x1c] sm:$0xf]
    %v176 = vld [vmem:[#allocation11 + $0x20] sm:$0xf]
    %v177 = vld [vmem:[#allocation11 + $0x24] sm:$0xf]
    %v178 = vld [vmem:[#allocation11 + $0x28] sm:$0xf]
    %v179 = vld [vmem:[#allocation11 + $0x2c] sm:$0xf]
    %v180 = vld [vmem:[#allocation11 + $0x30] sm:$0xf]
    %v181 = vld [vmem:[#allocation11 + $0x34] sm:$0xf]
    %v182 = vld [vmem:[#allocation11 + $0x38] sm:$0xf]
    %v183 = vld [vmem:[#allocation11 + $0x3c] sm:$0xf]
    %v184 = vld [vmem:[#allocation14] sm:$0x1]
    %v185 = vperm.slane %v184, 0
    %v188 = vunpack.c.l.b16 %v166
    %v189 = vunpack.c.l.b16 %v167
    %v190 = vpack.c.b16 %v189, %v188
    %v208 = vunpack.c.l.b16 %v168
    %v209 = vunpack.c.l.b16 %v169
    %v210 = vunpack.c.l.b16 %v170
    %v211 = vunpack.c.l.b16 %v171
    %v212 = vunpack.c.l.b16 %v172
    %v213 = vunpack.c.l.b16 %v173
    %v214 = vunpack.c.l.b16 %v174
    %v215 = vunpack.c.l.b16 %v175
    %v216 = vunpack.c.l.b16 %v176
    %v217 = vunpack.c.l.b16 %v177
    %v218 = vunpack.c.l.b16 %v178
    %v219 = vunpack.c.l.b16 %v179
    %v220 = vunpack.c.l.b16 %v180
    %v221 = vunpack.c.l.b16 %v181
    %v222 = vunpack.c.l.b16 %v182
    %v223 = vunpack.c.l.b16 %v183
    %v224 = vpack.c.b16 %v209, %v208
    %v225 = vpack.c.b16 %v211, %v210
    %v226 = vpack.c.b16 %v213, %v212
    %v227 = vpack.c.b16 %v215, %v214
    %v228 = vpack.c.b16 %v217, %v216
    %v229 = vpack.c.b16 %v219, %v218
    %v230 = vpack.c.b16 %v221, %v220
    %v231 = vpack.c.b16 %v223, %v222
    %240 = vmatpush.bf16.msra.mxu0 %v231
    %241 = vmatpush.bf16.msra.mxu0 %v230
    %242 = vmatpush.bf16.msra.mxu0 %v229
    %243 = vmatpush.bf16.msra.mxu0 %v228
    %244 = vmatpush.bf16.msra.mxu0 %v227
    %245 = vmatpush.bf16.msra.mxu0 %v226
    %246 = vmatpush.bf16.msra.mxu0 %v225
    %247 = vmatpush.bf16.msra.mxu0 %v224
    %248 = vmatmul.bf16.gmra.mxu0 %v190
    %v249 = vpop.f32.mrf.mxu0
    %v250 = vadd.f32 %v185, %v249
    %v251 = vpop.f32.mrf.mxu0
    %v252 = vadd.f32 %v185, %v251
    %253 = vdwg.mxu0
    %vm254 = vcmp.gt.f32.partialorder %v250, 0.0
    %vm255 = vcmp.gt.f32.partialorder %v252, 0.0
    %v256 = vmul.f32 %v250, 0.2
    %v257 = vmul.f32 %v252, 0.2
    %v258 = vsel %vm254, %v250, %v256
    %v259 = vsel %vm255, %v252, %v257
    %v260 = vpack.c.bf16 %v258, %v258
    %v261 = vpack.c.bf16 %v259, %v259
    %262 = vst [vmem:[#allocation2] sm:$0xf] %v260
    %263 = vst [vmem:[#allocation2 + $0x4] sm:$0xf] %v261
    %v264 = vld [vmem:[%s1] sm:$0xf]
    %v265 = vld [vmem:[%s1 + $0x4] sm:$0xf]
    %s266 = scalar_lea.vmem [#allocation11], 64
    %v267 = vld [vmem:[%s266] sm:$0xf]
    %v268 = vld [vmem:[%s266 + $0x4] sm:$0xf]
    %v269 = vld [vmem:[%s266 + $0x8] sm:$0xf]
    %v270 = vld [vmem:[%s266 + $0xc] sm:$0xf]
    %v271 = vld [vmem:[%s266 + $0x10] sm:$0xf]
    %v272 = vld [vmem:[%s266 + $0x14] sm:$0xf]
    %v273 = vld [vmem:[%s266 + $0x18] sm:$0xf]
    %v274 = vld [vmem:[%s266 + $0x1c] sm:$0xf]
    %v275 = vld [vmem:[%s266 + $0x20] sm:$0xf]
    %v276 = vld [vmem:[%s266 + $0x24] sm:$0xf]
    %v277 = vld [vmem:[%s266 + $0x28] sm:$0xf]
    %v278 = vld [vmem:[%s266 + $0x2c] sm:$0xf]
    %v279 = vld [vmem:[%s266 + $0x30] sm:$0xf]
    %v280 = vld [vmem:[%s266 + $0x34] sm:$0xf]
    %v281 = vld [vmem:[%s266 + $0x38] sm:$0xf]
    %v282 = vld [vmem:[%s266 + $0x3c] sm:$0xf]
    %v283 = vld [vmem:[#allocation14 + $0x1] sm:$0x1]
    %v284 = vperm.slane %v283, 0
    %v287 = vunpack.c.l.b16 %v264
    %v288 = vunpack.c.l.b16 %v265
    %v289 = vpack.c.b16 %v288, %v287
    %v307 = vunpack.c.l.b16 %v267
    %v308 = vunpack.c.l.b16 %v268
    %v309 = vunpack.c.l.b16 %v269
    %v310 = vunpack.c.l.b16 %v270
    %v311 = vunpack.c.l.b16 %v271
    %v312 = vunpack.c.l.b16 %v272
    %v313 = vunpack.c.l.b16 %v273
    %v314 = vunpack.c.l.b16 %v274
    %v315 = vunpack.c.l.b16 %v275
    %v316 = vunpack.c.l.b16 %v276
    %v317 = vunpack.c.l.b16 %v277
    %v318 = vunpack.c.l.b16 %v278
    %v319 = vunpack.c.l.b16 %v279
    %v320 = vunpack.c.l.b16 %v280
    %v321 = vunpack.c.l.b16 %v281
    %v322 = vunpack.c.l.b16 %v282
    %v323 = vpack.c.b16 %v308, %v307
    %v324 = vpack.c.b16 %v310, %v309
    %v325 = vpack.c.b16 %v312, %v311
    %v326 = vpack.c.b16 %v314, %v313
    %v327 = vpack.c.b16 %v316, %v315
    %v328 = vpack.c.b16 %v318, %v317
    %v329 = vpack.c.b16 %v320, %v319
    %v330 = vpack.c.b16 %v322, %v321
    %339 = vmatpush.bf16.msra.mxu0 %v330
    %340 = vmatpush.bf16.msra.mxu0 %v329
    %341 = vmatpush.bf16.msra.mxu0 %v328
    %342 = vmatpush.bf16.msra.mxu0 %v327
    %343 = vmatpush.bf16.msra.mxu0 %v326
    %344 = vmatpush.bf16.msra.mxu0 %v325
    %345 = vmatpush.bf16.msra.mxu0 %v324
    %346 = vmatpush.bf16.msra.mxu0 %v323
    %347 = vmatmul.bf16.gmra.mxu0 %v289
    %v348 = vpop.f32.mrf.mxu0
    %v349 = vadd.f32 %v284, %v348
    %v350 = vpop.f32.mrf.mxu0
    %v351 = vadd.f32 %v284, %v350
    %352 = vdwg.mxu0
    %vm353 = vcmp.gt.f32.partialorder %v349, 0.0
    %vm354 = vcmp.gt.f32.partialorder %v351, 0.0
    %v355 = vmul.f32 %v349, 0.2
    %v356 = vmul.f32 %v351, 0.2
    %v357 = vsel %vm353, %v349, %v355
    %v358 = vsel %vm354, %v351, %v356
    %v359 = vpack.c.bf16 %v357, %v357
    %v360 = vpack.c.bf16 %v358, %v358
    %361 = vst [vmem:[#allocation2 + $0x8] sm:$0xf] %v359
    %362 = vst [vmem:[#allocation2 + $0xc] sm:$0xf] %v360
    %v363 = vld [vmem:[#allocation3] sm:$0xf]
    %v364 = vld [vmem:[#allocation3 + $0x4] sm:$0xf]
    %v365 = vld [vmem:[#allocation2] sm:$0xf]
    %v366 = vld [vmem:[#allocation2 + $0x4] sm:$0xf]
    %v367 = vld [vmem:[#allocation12] sm:$0xf]
    %v368 = vld [vmem:[#allocation12 + $0x4] sm:$0xf]
    %v369 = vld [vmem:[#allocation12 + $0x8] sm:$0xf]
    %v370 = vld [vmem:[#allocation12 + $0xc] sm:$0xf]
    %v371 = vld [vmem:[#allocation12 + $0x10] sm:$0xf]
    %v372 = vld [vmem:[#allocation12 + $0x14] sm:$0xf]
    %v373 = vld [vmem:[#allocation12 + $0x18] sm:$0xf]
    %v374 = vld [vmem:[#allocation12 + $0x1c] sm:$0xf]
    %v375 = vld [vmem:[#allocation12 + $0x20] sm:$0xf]
    %v376 = vld [vmem:[#allocation12 + $0x24] sm:$0xf]
    %v377 = vld [vmem:[#allocation12 + $0x28] sm:$0xf]
    %v378 = vld [vmem:[#allocation12 + $0x2c] sm:$0xf]
    %v379 = vld [vmem:[#allocation12 + $0x30] sm:$0xf]
    %v380 = vld [vmem:[#allocation12 + $0x34] sm:$0xf]
    %v381 = vld [vmem:[#allocation12 + $0x38] sm:$0xf]
    %v382 = vld [vmem:[#allocation12 + $0x3c] sm:$0xf]
    %v385 = vunpack.c.l.b16 %v365
    %v386 = vunpack.c.l.b16 %v366
    %v387 = vpack.c.b16 %v386, %v385
    %v405 = vunpack.c.l.b16 %v367
    %v406 = vunpack.c.l.b16 %v368
    %v407 = vunpack.c.l.b16 %v369
    %v408 = vunpack.c.l.b16 %v370
    %v409 = vunpack.c.l.b16 %v371
    %v410 = vunpack.c.l.b16 %v372
    %v411 = vunpack.c.l.b16 %v373
    %v412 = vunpack.c.l.b16 %v374
    %v413 = vunpack.c.l.b16 %v375
    %v414 = vunpack.c.l.b16 %v376
    %v415 = vunpack.c.l.b16 %v377
    %v416 = vunpack.c.l.b16 %v378
    %v417 = vunpack.c.l.b16 %v379
    %v418 = vunpack.c.l.b16 %v380
    %v419 = vunpack.c.l.b16 %v381
    %v420 = vunpack.c.l.b16 %v382
    %v421 = vpack.c.b16 %v406, %v405
    %v422 = vpack.c.b16 %v408, %v407
    %v423 = vpack.c.b16 %v410, %v409
    %v424 = vpack.c.b16 %v412, %v411
    %v425 = vpack.c.b16 %v414, %v413
    %v426 = vpack.c.b16 %v416, %v415
    %v427 = vpack.c.b16 %v418, %v417
    %v428 = vpack.c.b16 %v420, %v419
    %437 = vmatpush.bf16.msra.mxu0 %v428
    %438 = vmatpush.bf16.msra.mxu0 %v427
    %439 = vmatpush.bf16.msra.mxu0 %v426
    %440 = vmatpush.bf16.msra.mxu0 %v425
    %441 = vmatpush.bf16.msra.mxu0 %v424
    %442 = vmatpush.bf16.msra.mxu0 %v423
    %443 = vmatpush.bf16.msra.mxu0 %v422
    %444 = vmatpush.bf16.msra.mxu0 %v421
    %445 = vmatmul.bf16.gmra.mxu0 %v387
    %v446 = vpop.f32.mrf.mxu0
    %v447 = vadd.f32 0.0, %v446
    %v448 = vpop.f32.mrf.mxu0
    %v449 = vadd.f32 0.0, %v448
    %450 = vdwg.mxu0
    %v451 = vpack.c.bf16 %v449, %v447
    %v452 = vld [vmem:[#allocation14 + $0x2] sm:$0x1]
    %v453 = vperm.slane %v452, 0
    %v456 = vunpack.c.l.b16 %v363
    %v457 = vunpack.c.l.b16 %v364
    %v458 = vpack.c.b16 %v457, %v456
    %vm459 = vcmask 130048
    %v461 = vsel %vm459, %v458, 0
    %463 = vmatpush.bf16.msra.mxu0 0
    %464 = vmatpush.bf16.msra.mxu0 0
    %465 = vmatpush.bf16.msra.mxu0 0
    %466 = vmatpush.bf16.msra.mxu0 0
    %467 = vmatpush.bf16.msra.mxu0 0
    %468 = vmatpush.bf16.msra.mxu0 0
    %469 = vmatpush.bf16.msra.mxu0 0
    %470 = vmatpush.bf16.msra.mxu0 %v451
    %471 = vmatmul.bf16.gmra.mxu0 %v461
    %v472 = vpop.f32.mrf.mxu0
    %v473 = vadd.f32 %v453, %v472
    %v474 = vpop.f32.mrf.mxu0
    %v475 = vadd.f32 %v453, %v474
    %476 = vdwg.mxu0
    %vm477 = vcmp.gt.f32.partialorder %v473, 0.0
    %vm478 = vcmp.gt.f32.partialorder %v475, 0.0
    %v479 = vmul.f32 %v473, 0.2
    %v480 = vmul.f32 %v475, 0.2
    %v481 = vsel %vm477, %v473, %v479
    %v482 = vsel %vm478, %v475, %v480
    %v483 = vpack.c.bf16 %v481, %v481
    %v484 = vpack.c.bf16 %v482, %v482
    %485 = vst [vmem:[#allocation2] sm:$0xf] %v483
    %486 = vst [vmem:[#allocation2 + $0x4] sm:$0xf] %v484
    %v487 = vld [vmem:[#allocation2] sm:$0xf]
    %v488 = vld [vmem:[#allocation2 + $0x4] sm:$0xf]
    %s489 = scalar_lea.vmem [#allocation12], 64
    %v490 = vld [vmem:[%s489] sm:$0xf]
    %v491 = vld [vmem:[%s489 + $0x4] sm:$0xf]
    %v492 = vld [vmem:[%s489 + $0x8] sm:$0xf]
    %v493 = vld [vmem:[%s489 + $0xc] sm:$0xf]
    %v494 = vld [vmem:[%s489 + $0x10] sm:$0xf]
    %v495 = vld [vmem:[%s489 + $0x14] sm:$0xf]
    %v496 = vld [vmem:[%s489 + $0x18] sm:$0xf]
    %v497 = vld [vmem:[%s489 + $0x1c] sm:$0xf]
    %v498 = vld [vmem:[%s489 + $0x20] sm:$0xf]
    %v499 = vld [vmem:[%s489 + $0x24] sm:$0xf]
    %v500 = vld [vmem:[%s489 + $0x28] sm:$0xf]
    %v501 = vld [vmem:[%s489 + $0x2c] sm:$0xf]
    %v502 = vld [vmem:[%s489 + $0x30] sm:$0xf]
    %v503 = vld [vmem:[%s489 + $0x34] sm:$0xf]
    %v504 = vld [vmem:[%s489 + $0x38] sm:$0xf]
    %v505 = vld [vmem:[%s489 + $0x3c] sm:$0xf]
    %v508 = vunpack.c.l.b16 %v487
    %v509 = vunpack.c.l.b16 %v488
    %v510 = vpack.c.b16 %v509, %v508
    %v528 = vunpack.c.l.b16 %v490
    %v529 = vunpack.c.l.b16 %v491
    %v530 = vunpack.c.l.b16 %v492
    %v531 = vunpack.c.l.b16 %v493
    %v532 = vunpack.c.l.b16 %v494
    %v533 = vunpack.c.l.b16 %v495
    %v534 = vunpack.c.l.b16 %v496
    %v535 = vunpack.c.l.b16 %v497
    %v536 = vunpack.c.l.b16 %v498
    %v537 = vunpack.c.l.b16 %v499
    %v538 = vunpack.c.l.b16 %v500
    %v539 = vunpack.c.l.b16 %v501
    %v540 = vunpack.c.l.b16 %v502
    %v541 = vunpack.c.l.b16 %v503
    %v542 = vunpack.c.l.b16 %v504
    %v543 = vunpack.c.l.b16 %v505
    %v544 = vpack.c.b16 %v529, %v528
    %v545 = vpack.c.b16 %v531, %v530
    %v546 = vpack.c.b16 %v533, %v532
    %v547 = vpack.c.b16 %v535, %v534
    %v548 = vpack.c.b16 %v537, %v536
    %v549 = vpack.c.b16 %v539, %v538
    %v550 = vpack.c.b16 %v541, %v540
    %v551 = vpack.c.b16 %v543, %v542
    %560 = vmatpush.bf16.msra.mxu0 %v551
    %561 = vmatpush.bf16.msra.mxu0 %v550
    %562 = vmatpush.bf16.msra.mxu0 %v549
    %563 = vmatpush.bf16.msra.mxu0 %v548
    %564 = vmatpush.bf16.msra.mxu0 %v547
    %565 = vmatpush.bf16.msra.mxu0 %v546
    %566 = vmatpush.bf16.msra.mxu0 %v545
    %567 = vmatpush.bf16.msra.mxu0 %v544
    %568 = vmatmul.bf16.gmra.mxu0 %v510
    %v569 = vpop.f32.mrf.mxu0
    %v570 = vadd.f32 0.0, %v569
    %v571 = vpop.f32.mrf.mxu0
    %v572 = vadd.f32 0.0, %v571
    %573 = vdwg.mxu0
    %v574 = vpack.c.bf16 %v572, %v570
    %v575 = vld [vmem:[#allocation14 + $0x3] sm:$0x1]
    %v576 = vperm.slane %v575, 0
    %577 = vmatpush.bf16.msra.mxu0 0
    %578 = vmatpush.bf16.msra.mxu0 0
    %579 = vmatpush.bf16.msra.mxu0 0
    %580 = vmatpush.bf16.msra.mxu0 0
    %581 = vmatpush.bf16.msra.mxu0 0
    %582 = vmatpush.bf16.msra.mxu0 0
    %583 = vmatpush.bf16.msra.mxu0 0
    %584 = vmatpush.bf16.msra.mxu0 %v574
    %585 = vmatmul.bf16.gmra.mxu0 %v461
    %v586 = vpop.f32.mrf.mxu0
    %v587 = vadd.f32 %v576, %v586
    %v588 = vpop.f32.mrf.mxu0
    %v589 = vadd.f32 %v576, %v588
    %590 = vdwg.mxu0
    %vm591 = vcmp.gt.f32.partialorder %v587, 0.0
    %vm592 = vcmp.gt.f32.partialorder %v589, 0.0
    %v593 = vmul.f32 %v587, 0.2
    %v594 = vmul.f32 %v589, 0.2
    %v595 = vsel %vm591, %v587, %v593
    %v596 = vsel %vm592, %v589, %v594
    %v597 = vpack.c.bf16 %v595, %v595
    %v598 = vpack.c.bf16 %v596, %v596
    %599 = vst [vmem:[#allocation2] sm:$0xf] %v597
    %600 = vst [vmem:[#allocation2 + $0x4] sm:$0xf] %v598
    %v601 = vld [vmem:[#allocation2] sm:$0xf]
    %v602 = vld [vmem:[#allocation2 + $0x4] sm:$0xf]
    %v603 = vld [vmem:[#allocation2 + $0x8] sm:$0xf]
    %v604 = vld [vmem:[#allocation2 + $0xc] sm:$0xf]
    %s605 = scalar_lea.vmem [#allocation12], 128
    %v606 = vld [vmem:[%s605] sm:$0xf]
    %v607 = vld [vmem:[%s605 + $0x4] sm:$0xf]
    %v608 = vld [vmem:[%s605 + $0x8] sm:$0xf]
    %v609 = vld [vmem:[%s605 + $0xc] sm:$0xf]
    %v610 = vld [vmem:[%s605 + $0x10] sm:$0xf]
    %v611 = vld [vmem:[%s605 + $0x14] sm:$0xf]
    %v612 = vld [vmem:[%s605 + $0x18] sm:$0xf]
    %v613 = vld [vmem:[%s605 + $0x1c] sm:$0xf]
    %v614 = vld [vmem:[%s605 + $0x20] sm:$0xf]
    %v615 = vld [vmem:[%s605 + $0x24] sm:$0xf]
    %v616 = vld [vmem:[%s605 + $0x28] sm:$0xf]
    %v617 = vld [vmem:[%s605 + $0x2c] sm:$0xf]
    %v618 = vld [vmem:[%s605 + $0x30] sm:$0xf]
    %v619 = vld [vmem:[%s605 + $0x34] sm:$0xf]
    %v620 = vld [vmem:[%s605 + $0x38] sm:$0xf]
    %v621 = vld [vmem:[%s605 + $0x3c] sm:$0xf]
    %v626 = vunpack.c.l.b16 %v601
    %v627 = vunpack.c.l.b16 %v602
    %v628 = vunpack.c.l.b16 %v603
    %v629 = vunpack.c.l.b16 %v604
    %v630 = vpack.c.b16 %v627, %v626
    %v631 = vpack.c.b16 %v629, %v628
    %v650 = vunpack.c.l.b16 %v606
    %v651 = vunpack.c.l.b16 %v607
    %v652 = vunpack.c.l.b16 %v608
    %v653 = vunpack.c.l.b16 %v609
    %v654 = vunpack.c.l.b16 %v610
    %v655 = vunpack.c.l.b16 %v611
    %v656 = vunpack.c.l.b16 %v612
    %v657 = vunpack.c.l.b16 %v613
    %v658 = vunpack.c.l.b16 %v614
    %v659 = vunpack.c.l.b16 %v615
    %v660 = vunpack.c.l.b16 %v616
    %v661 = vunpack.c.l.b16 %v617
    %v662 = vunpack.c.l.b16 %v618
    %v663 = vunpack.c.l.b16 %v619
    %v664 = vunpack.c.l.b16 %v620
    %v665 = vunpack.c.l.b16 %v621
    %v666 = vpack.c.b16 %v651, %v650
    %v667 = vpack.c.b16 %v653, %v652
    %v668 = vpack.c.b16 %v655, %v654
    %v669 = vpack.c.b16 %v657, %v656
    %v670 = vpack.c.b16 %v659, %v658
    %v671 = vpack.c.b16 %v661, %v660
    %v672 = vpack.c.b16 %v663, %v662
    %v673 = vpack.c.b16 %v665, %v664
    %682 = vmatpush.bf16.msra.mxu0 %v673
    %683 = vmatpush.bf16.msra.mxu0 %v672
    %684 = vmatpush.bf16.msra.mxu0 %v671
    %685 = vmatpush.bf16.msra.mxu0 %v670
    %686 = vmatpush.bf16.msra.mxu0 %v669
    %687 = vmatpush.bf16.msra.mxu0 %v668
    %688 = vmatpush.bf16.msra.mxu0 %v667
    %689 = vmatpush.bf16.msra.mxu0 %v666
    %690 = vmatmul.bf16.gmra.mxu0 %v630
    %v691 = vpop.f32.mrf.mxu0
    %v692 = vadd.f32 0.0, %v691
    %v693 = vpop.f32.mrf.mxu0
    %v694 = vadd.f32 0.0, %v693
    %695 = vmatmul.bf16.gmra.mxu0 %v631
    %v696 = vpop.f32.mrf.mxu0
    %v697 = vadd.f32 0.0, %v696
    %v698 = vpop.f32.mrf.mxu0
    %v699 = vadd.f32 0.0, %v698
    %700 = vdwg.mxu0
    %v701 = vld [vmem:[#allocation14 + $0x4] sm:$0x1]
    %v702 = vld [vmem:[%s3] sm:$0xff]
    %v703 = vld [vmem:[%s3 + $0x8] sm:$0xff]
    %705 = vset.pattern.permute.xlu0 0
    %706 = vperm.xlu0 %705, %v702
    %v707 = vpop.permute.xlu0 %706
    %710 = vset.pattern.permute.xlu0 0
    %711 = vperm.xlu0 %710, %v703
    %v712 = vpop.permute.xlu0 %711
    %v714 = vmul.f32 %v707, %v692
    %v715 = vmul.f32 %v712, %v694
    %v716 = vld [vmem:[#allocation6] sm:$0xf]
    %v717 = vld [vmem:[#allocation6 + $0x4] sm:$0xf]
    %v718 = vpack.c.bf16 %v699, %v697
    %v721 = vunpack.c.l.b16 %v716
    %v722 = vunpack.c.l.b16 %v717
    %v723 = vpack.c.b16 %v722, %v721
    %v725 = vsel %vm459, %v723, 0
    %727 = vmatpush.bf16.msra.mxu0 0
    %728 = vmatpush.bf16.msra.mxu0 0
    %729 = vmatpush.bf16.msra.mxu0 0
    %730 = vmatpush.bf16.msra.mxu0 0
    %731 = vmatpush.bf16.msra.mxu0 0
    %732 = vmatpush.bf16.msra.mxu0 0
    %733 = vmatpush.bf16.msra.mxu0 0
    %734 = vmatpush.bf16.msra.mxu0 %v718
    %735 = vmatmul.bf16.gmra.mxu0 %v725
    %v736 = vpop.f32.mrf.mxu0
    %v737 = vadd.f32 0.0, %v736
    %v738 = vpop.f32.mrf.mxu0
    %v739 = vadd.f32 0.0, %v738
    %740 = vdwg.mxu0
    %v741 = vadd.f32 %v714, %v737
    %v742 = vadd.f32 %v715, %v739
    %v743 = vld [vmem:[#allocation8] sm:$0xf]
    %v744 = vld [vmem:[#allocation8 + $0x4] sm:$0xf]
    %v745 = vpack.c.bf16 %v694, %v692
    %v746 = vld [vmem:[#allocation9] sm:$0xf]
    %v747 = vld [vmem:[#allocation9 + $0x4] sm:$0xf]
    %v750 = vunpack.c.l.b16 %v746
    %v751 = vunpack.c.l.b16 %v747
    %v752 = vpack.c.b16 %v751, %v750
    %v754 = vsel %vm459, %v752, 0
    %756 = vmatpush.bf16.msra.mxu0 0
    %757 = vmatpush.bf16.msra.mxu0 0
    %758 = vmatpush.bf16.msra.mxu0 0
    %759 = vmatpush.bf16.msra.mxu0 0
    %760 = vmatpush.bf16.msra.mxu0 0
    %761 = vmatpush.bf16.msra.mxu0 0
    %762 = vmatpush.bf16.msra.mxu0 0
    %763 = vmatpush.bf16.msra.mxu0 %v718
    %764 = vmatmul.bf16.gmra.mxu0 %v754
    %v765 = vpop.f32.mrf.mxu0
    %v766 = vadd.f32 0.0, %v765
    %v767 = vpop.f32.mrf.mxu0
    %v768 = vadd.f32 0.0, %v767
    %769 = vdwg.mxu0
    %v772 = vunpack.c.l.b16 %v743
    %v773 = vunpack.c.l.b16 %v744
    %v774 = vpack.c.b16 %v773, %v772
    %v776 = vsel %vm459, %v774, 0
    %778 = vmatpush.bf16.msra.mxu0 0
    %779 = vmatpush.bf16.msra.mxu0 0
    %780 = vmatpush.bf16.msra.mxu0 0
    %781 = vmatpush.bf16.msra.mxu0 0
    %782 = vmatpush.bf16.msra.mxu0 0
    %783 = vmatpush.bf16.msra.mxu0 0
    %784 = vmatpush.bf16.msra.mxu0 0
    %785 = vmatpush.bf16.msra.mxu0 %v745
    %786 = vmatmul.bf16.gmra.mxu0 %v776
    %v787 = vpop.f32.mrf.mxu0
    %v788 = vadd.f32 %v766, %v787
    %v789 = vpop.f32.mrf.mxu0
    %v790 = vadd.f32 %v768, %v789
    %791 = vdwg.mxu0
    %v792 = vperm.slane %v701, 0
    %v793 = vadd.f32 %v741, %v792
    %v794 = vadd.f32 %v742, %v792
    %vm795 = vcmp.gt.f32.partialorder %v793, 0.0
    %vm796 = vcmp.gt.f32.partialorder %v794, 0.0
    %v797 = vmul.f32 %v793, 0.2
    %v798 = vmul.f32 %v794, 0.2
    %v799 = vsel %vm795, %v793, %v797
    %v800 = vsel %vm796, %v794, %v798
    %v801 = vpack.c.bf16 %v799, %v799
    %v802 = vpack.c.bf16 %v800, %v800
    %803 = vst [vmem:[#allocation2] sm:$0xf] %v801
    %804 = vst [vmem:[#allocation2 + $0x4] sm:$0xf] %v802
    %v805 = vadd.f32 %v788, %v792
    %v806 = vadd.f32 %v790, %v792
    %vm807 = vcmp.gt.f32.partialorder %v805, 0.0
    %vm808 = vcmp.gt.f32.partialorder %v806, 0.0
    %v809 = vmul.f32 %v805, 0.2
    %v810 = vmul.f32 %v806, 0.2
    %v811 = vsel %vm807, %v805, %v809
    %v812 = vsel %vm808, %v806, %v810
    %v813 = vpack.c.bf16 %v811, %v811
    %v814 = vpack.c.bf16 %v812, %v812
    %815 = vst [vmem:[#allocation2 + $0x8] sm:$0xf] %v813
    %816 = vst [vmem:[#allocation2 + $0xc] sm:$0xf] %v814
    %v817 = vld [vmem:[#allocation2] sm:$0xf]
    %v818 = vld [vmem:[#allocation2 + $0x4] sm:$0xf]
    %v819 = vld [vmem:[#allocation2 + $0x8] sm:$0xf]
    %v820 = vld [vmem:[#allocation2 + $0xc] sm:$0xf]
    %v821 = vld [vmem:[#allocation15] sm:$0xf]
    %v822 = vld [vmem:[#allocation15 + $0x4] sm:$0xf]
    %v823 = vld [vmem:[#allocation15 + $0x8] sm:$0xf]
    %v824 = vld [vmem:[#allocation15 + $0xc] sm:$0xf]
    %v825 = vld [vmem:[#allocation15 + $0x10] sm:$0xf]
    %v826 = vld [vmem:[#allocation15 + $0x14] sm:$0xf]
    %v827 = vld [vmem:[#allocation15 + $0x18] sm:$0xf]
    %v828 = vld [vmem:[#allocation15 + $0x1c] sm:$0xf]
    %v829 = vld [vmem:[#allocation15 + $0x20] sm:$0xf]
    %v830 = vld [vmem:[#allocation15 + $0x24] sm:$0xf]
    %v831 = vld [vmem:[#allocation15 + $0x28] sm:$0xf]
    %v832 = vld [vmem:[#allocation15 + $0x2c] sm:$0xf]
    %v833 = vld [vmem:[#allocation15 + $0x30] sm:$0xf]
    %v834 = vld [vmem:[#allocation15 + $0x34] sm:$0xf]
    %v835 = vld [vmem:[#allocation15 + $0x38] sm:$0xf]
    %v836 = vld [vmem:[#allocation15 + $0x3c] sm:$0xf]
    %v837 = vld [vmem:[%s11] sm:$0x1]
    %v839 = vperm.slane %v837, 0
    %v845 = vunpack.c.l.b16 %v817
    %v846 = vunpack.c.l.b16 %v818
    %v847 = vunpack.c.l.b16 %v819
    %v848 = vunpack.c.l.b16 %v820
    %v849 = vpack.c.b16 %v846, %v845
    %v850 = vpack.c.b16 %v848, %v847
    %v869 = vunpack.c.l.b16 %v821
    %v870 = vunpack.c.l.b16 %v822
    %v871 = vunpack.c.l.b16 %v823
    %v872 = vunpack.c.l.b16 %v824
    %v873 = vunpack.c.l.b16 %v825
    %v874 = vunpack.c.l.b16 %v826
    %v875 = vunpack.c.l.b16 %v827
    %v876 = vunpack.c.l.b16 %v828
    %v877 = vunpack.c.l.b16 %v829
    %v878 = vunpack.c.l.b16 %v830
    %v879 = vunpack.c.l.b16 %v831
    %v880 = vunpack.c.l.b16 %v832
    %v881 = vunpack.c.l.b16 %v833
    %v882 = vunpack.c.l.b16 %v834
    %v883 = vunpack.c.l.b16 %v835
    %v884 = vunpack.c.l.b16 %v836
    %v885 = vpack.c.b16 %v870, %v869
    %v886 = vpack.c.b16 %v872, %v871
    %v887 = vpack.c.b16 %v874, %v873
    %v888 = vpack.c.b16 %v876, %v875
    %v889 = vpack.c.b16 %v878, %v877
    %v890 = vpack.c.b16 %v880, %v879
    %v891 = vpack.c.b16 %v882, %v881
    %v892 = vpack.c.b16 %v884, %v883
    %901 = vmatpush.bf16.msra.mxu0 %v892
    %902 = vmatpush.bf16.msra.mxu0 %v891
    %903 = vmatpush.bf16.msra.mxu0 %v890
    %904 = vmatpush.bf16.msra.mxu0 %v889
    %905 = vmatpush.bf16.msra.mxu0 %v888
    %906 = vmatpush.bf16.msra.mxu0 %v887
    %907 = vmatpush.bf16.msra.mxu0 %v886
    %908 = vmatpush.bf16.msra.mxu0 %v885
    %909 = vmatmul.bf16.gmra.mxu0 %v849
    %v910 = vpop.f32.mrf.mxu0
    %v911 = vadd.f32 %v839, %v910
    %v912 = vpop.f32.mrf.mxu0
    %v913 = vadd.f32 %v839, %v912
    %914 = vmatmul.bf16.gmra.mxu0 %v850
    %v915 = vpop.f32.mrf.mxu0
    %v916 = vadd.f32 %v839, %v915
    %v917 = vpop.f32.mrf.mxu0
    %v918 = vadd.f32 %v839, %v917
    %919 = vdwg.mxu0
    %v920 = vlaneseq
    %v921 = vand.u32 %v920, 127
    %vm922 = vcmp.lt.s32.totalorder %v921, 4
    %v923 = vsel %vm922, %v911, -1e+30
    %v924 = vsel %vm922, %v913, -1e+30
    %v925 = vsel %vm922, %v916, -1e+30
    %v926 = vsel %vm922, %v918, -1e+30
    %927 = vmax.xlane.f32.xlu0 %v923
    %v928 = vpop.xlane.xlu0 %927
    %929 = vmax.xlane.f32.xlu0 %v924
    %v930 = vpop.xlane.xlu0 %929
    %931 = vmax.xlane.f32.xlu0 %v925
    %v932 = vpop.xlane.xlu0 %931
    %933 = vmax.xlane.f32.xlu0 %v926
    %v934 = vpop.xlane.xlu0 %933
    %v935 = vsub.f32 %v923, %v928
    %v936 = vsub.f32 %v924, %v930
    %v937 = vsub.f32 %v925, %v932
    %v938 = vsub.f32 %v926, %v934
    %v939 = vmul.f32 %v935, 1.442695
    %v940 = vpow.pop %v939
    %v941 = vmul.f32 %v936, 1.442695
    %v942 = vpow.pop %v941
    %v943 = vmul.f32 %v937, 1.442695
    %v944 = vpow.pop %v943
    %v945 = vmul.f32 %v938, 1.442695
    %v946 = vpow.pop %v945
    %947 = vadd.xlane.f32.xlu0 %v940
    %v948 = vpop.xlane.xlu0 %947
    %949 = vadd.xlane.f32.xlu0 %v942
    %v950 = vpop.xlane.xlu0 %949
    %951 = vadd.xlane.f32.xlu0 %v944
    %v952 = vpop.xlane.xlu0 %951
    %953 = vadd.xlane.f32.xlu0 %v946
    %v954 = vpop.xlane.xlu0 %953
    %v955 = vlog2.pop %v948
    %v956 = vmul.f32 %v955, 0.6931472
    %v957 = vlog2.pop %v950
    %v958 = vmul.f32 %v957, 0.6931472
    %v959 = vlog2.pop %v952
    %v960 = vmul.f32 %v959, 0.6931472
    %v961 = vlog2.pop %v954
    %v962 = vmul.f32 %v961, 0.6931472
    %v963 = vsub.f32 %v935, %v956
    %v964 = vsub.f32 %v936, %v958
    %v965 = vsub.f32 %v937, %v960
    %v966 = vsub.f32 %v938, %v962
    %967 = vst [vmem:[#allocation17] sm:$0xff] %v963
    %968 = vst [vmem:[#allocation17 + $0x8] sm:$0xff] %v964
    %969 = vst [vmem:[#allocation17 + $0x10] sm:$0xff] %v965
    %970 = vst [vmem:[#allocation17 + $0x18] sm:$0xff] %v966
    // Predicated region
    $region82: #{tpu_custom_call.1} parent=1 // pred_check
      _
    $region83: #{tpu_custom_call.1} parent=1 // pred_check_branch
      %972 = sbr.rel (0) target = $region85
    $region84: #{tpu_custom_call.1} parent=1 // pred_region
      %974 = vsyncadd [#allocation5], 0
      %s975 = sshll.u32 [#allocation17], 4
      %s976 = int_to_ptr.vmem [resolvable:$true] %s975
      %s977 = sshll.u32 %s12, 4
      %s978 = int_to_ptr.hbm [resolvable:$true] %s977
      %983 = dma.vmem_to_hbm [thread:$0]  %s976, 512, %s978, [#allocation5], 128, 128, 8
    $region85: #{tpu_custom_call.1} parent=1 // pred_fallthru
      _
    // Predicated region
    $region86: #{tpu_custom_call.1} parent=1 // pred_check
      _
    $region87: #{tpu_custom_call.1} parent=1 // pred_check_branch
      %985 = sbr.rel (0) target = $region89
    $region88: #{tpu_custom_call.1} parent=1 // pred_region
      %987 = dma.done [#allocation5], 512
    $region89: #{tpu_custom_call.1} parent=1 // pred_fallthru
      _
    %988 = vsyncpa [#allocation4], 1
    %989 = vsyncpa [#allocation7], 1
    %990 = vsyncpa [#allocation10], 1
    %991 = vsyncpa [#allocation13], 1
    %992 = vsyncpa [#allocation16], 1
    %993 = vsyncpa [#allocation5], 1

</llo_original>
